<compile_context>
chip_gen: v5e
topology: v5e:2x2
jax: 0.10.0
libtpu: 0.0.40
codegen_flags: <defaults>
</compile_context>

<pallas_src>
import functools

import jax
import jax.numpy as jnp
from jax.experimental import pallas as pl
from jax.experimental.pallas import tpu as pltpu  # noqa: F401  (TPU backend)


# ---------------------------------------------------------------------------
# In-kernel helpers
# ---------------------------------------------------------------------------
def _conv_taps_matmul(x_ref, w_ref, *, n, lout, stride, k=3):
    """sum_k tap_k @ w[k], taps read straight from the padded VMEM tile.

    x_ref: (N, L+2, Cin) f32 padded input; w_ref: (K, Cin, Cout) bf16.
    Batch is flattened into the matmul M dim.  Returns f32 (N*Lout, Cout).
    """
    cin = x_ref.shape[2]
    acc = None
    for kk in range(k):
        if stride == 1:
            tap = x_ref[:, pl.ds(kk, lout), :]                  # (N, Lout, Cin)
        else:
            tap = x_ref[:, pl.ds(kk, lout, stride=stride), :]   # strided load
        tap = tap.reshape(n * lout, cin).astype(jnp.bfloat16)
        part = jnp.dot(tap, w_ref[kk], preferred_element_type=jnp.float32)
        acc = part if acc is None else acc + part
    return acc


# ---------------------------------------------------------------------------
# Pallas kernels
# ---------------------------------------------------------------------------
def conv_bn_relu_kernel(x_ref, w_ref, b_ref, o_ref, *, n, lout, stride):
    """Fused Conv1d(k=3, p=1, stride) + folded BatchNorm1d(eval) + ReLU."""
    cout = w_ref.shape[2]
    y = _conv_taps_matmul(x_ref, w_ref, n=n, lout=lout, stride=stride)
    y = jnp.maximum(y + b_ref[...], 0.0)                        # bias + ReLU (f32)
    o_ref[...] = y.reshape(n, lout, cout).astype(o_ref.dtype)


def head_kernel(xs_ref, wt_ref, bt_ref, deep_ref, *refs,
                num_tasks, cc, lout, n):
    """Fused task head: all ResidualAdaptors (one widened conv) + pooling +
    all classifiers in a single kernel invocation.

    refs = (w_cls_0, b_cls_0, ..., w_cls_{T-1}, b_cls_{T-1}, out_0, ..., out_{T-1})
    """
    w_cls = refs[0:2 * num_tasks:2]
    b_cls = refs[1:2 * num_tasks:2]
    outs = refs[2 * num_tasks:]

    # Fused ResidualAdaptor: conv3x3(stride=2) + folded BN + ReLU, all tasks at
    # once (weights concatenated along Cout -> num_tasks*Cc channels).
    tsf = _conv_taps_matmul(xs_ref, wt_ref, n=n, lout=lout, stride=2)
    tsf = jnp.maximum(tsf + bt_ref[...], 0.0)                   # (N*Lt, T*Cc)

    # mean(cat(deep, task, time)) == length-weighted mean of the two pools.
    pooled_tsf = jnp.mean(tsf.reshape(n, lout, num_tasks * cc), axis=1)  # (N, T*Cc)
    deep = deep_ref[...]                                        # (N, Td, Cc)
    td = deep.shape[1]
    pooled_deep = jnp.mean(deep, axis=1)                        # (N, Cc)
    w_d = td / (td + lout)
    w_t = lout / (td + lout)

    for i in range(num_tasks):
        pooled_i = w_d * pooled_deep + w_t * pooled_tsf[:, i * cc:(i + 1) * cc]
        y = jnp.dot(pooled_i, w_cls[i][...],
                    preferred_element_type=jnp.float32) + b_cls[i][...]
        outs[i][...] = y.astype(outs[i].dtype)


# ---------------------------------------------------------------------------
# Wrappers (only padding / param plumbing stays in plain JAX)
# ---------------------------------------------------------------------------
def conv_bn_relu(x, w, b, stride):
    """x: (N, L, Cin) f32, w: (K, Cin, Cout) bf16 (BN scale folded),
    b: (1, Cout) f32  ->  (N, Lout, Cout) f32."""
    n, l, _ = x.shape
    k, _, cout = w.shape
    lout = (l + 2 - k) // stride + 1
    xp = jnp.pad(x, ((0, 0), (1, 1), (0, 0)))                   # pad time axis
    kern = functools.partial(conv_bn_relu_kernel, n=n, lout=lout, stride=stride)
    # Single invocation (grid=()): whole padded input + weights live in VMEM
    # and the batch is flattened into the matmul M dim inside the kernel.
    # TODO(synk): for production L, tile the time axis (rows a multiple of 8,
    # sized for v7x's 64 MiB VMEM) and mark that grid axis "parallel".
    return pl.pallas_call(
        kern,
        out_shape=jax.ShapeDtypeStruct((n, lout, cout), jnp.float32),
    )(xp, w, b)


def fused_task_head(shallow, deep, tse_params, cls_params):
    """All TSE adaptors + classifiers in one pallas_call."""
    wt, bt = tse_params                     # (K, Cd, T*Cc) bf16, (1, T*Cc) f32
    n, l, _ = shallow.shape
    k = wt.shape[0]
    num_tasks = len(cls_params)
    cc = wt.shape[2] // num_tasks
    lout = (l + 2 - k) // 2 + 1             # ResidualAdaptor stride = 2
    xp = jnp.pad(shallow, ((0, 0), (1, 1), (0, 0)))

    cls_flat, out_shapes = [], []
    for w_cls, b_cls in cls_params:
        cls_flat += [w_cls, b_cls]
        out_shapes.append(jax.ShapeDtypeStruct((n, w_cls.shape[1]), jnp.float32))

    kern = functools.partial(head_kernel, num_tasks=num_tasks, cc=cc,
                             lout=lout, n=n)
    outs = pl.pallas_call(kern, out_shape=tuple(out_shapes))(
        xp, wt, bt, deep, *cls_flat)
    return list(outs)


# ---------------------------------------------------------------------------
# Deterministic parameter construction (BN folded, weights bf16)
# ---------------------------------------------------------------------------
def make_conv_bn_params(key, cin, cout, groups=1):
    k1, k2, k3 = jax.random.split(key, 3)
    w = 0.1 * jax.random.normal(k1, (cout, cin // groups, 3), jnp.float32)
    if groups > 1:
        # Block-diagonal dense expansion: exact, acceptable at groups=2/cin=4.
        # TODO(synk): switch to per-group dots inside the kernel for large groups.
        full = jnp.zeros((cout, cin, 3), jnp.float32)
        og, ig = cout // groups, cin // groups
        for g in range(groups):
            full = full.at[g * og:(g + 1) * og, g * ig:(g + 1) * ig, :].set(
                w[g * og:(g + 1) * og])
        w = full
    gamma = 1.0 + 0.1 * jax.random.normal(k2, (cout,), jnp.float32)
    beta = 0.1 * jax.random.normal(k3, (cout,), jnp.float32)
    mean = jnp.zeros((cout,), jnp.float32)
    var = jnp.ones((cout,), jnp.float32)
    scale = gamma / jnp.sqrt(var + 1e-5)          # eval-mode BN fold
    bias = beta - mean * scale
    w = w * scale[:, None, None]                  # fold BN scale into weights
    w_kic = jnp.transpose(w, (2, 1, 0)).astype(jnp.bfloat16)   # (K, Cin, Cout)
    return (w_kic, bias.reshape(1, -1))


def make_classifier_params(key, cin, ncat):
    k1, k2 = jax.random.split(key)
    w = 0.1 * jax.random.normal(k1, (cin, ncat), jnp.float32)
    b = 0.1 * jax.random.normal(k2, (ncat,), jnp.float32)
    return (w, b.reshape(1, -1))


# ---------------------------------------------------------------------------
# KDMTS_RA forward
# ---------------------------------------------------------------------------
def kdmts_ra_forward(x, params, strides_DE):
    # Shallow extractor: grouped conv-bn-relu, stride 1.
    shallow_feature = conv_bn_relu(x, *params["SE"], stride=1)

    # Deep extractor: stack of conv-bn-relu blocks.
    deep_feature = shallow_feature
    for p, s in zip(params["DE"], strides_DE):
        deep_feature = conv_bn_relu(deep_feature, *p, stride=s)

    # Fused task head: all ResidualAdaptors + classifiers in one kernel.
    predictions = fused_task_head(shallow_feature, deep_feature,
                                  params["TSE"], params["CLS"])
    return predictions, shallow_feature, deep_feature


# ---------------------------------------------------------------------------
if __name__ == "__main__":
    # Small, module-consistent config.
    N, L = 2, 16
    inchannel_SE, groups_SE = 4, 2
    inchannel_DE = 8
    inchannel_Cl = 16
    layers_DE, strides_DE = [1], [2]
    num_categories = [3, 5]

    key = jax.random.PRNGKey(0)
    keys = jax.random.split(key, 2 + len(strides_DE) + 2 * len(num_categories))
    ki = iter(keys)

    params = {
        "SE": make_conv_bn_params(next(ki), inchannel_SE, inchannel_DE,
                                  groups=groups_SE),
        "DE": [make_conv_bn_params(next(ki),
                                   inchannel_DE if i == 0 else inchannel_Cl,
                                   inchannel_Cl)
               for i in range(len(strides_DE))],
        "CLS": [make_classifier_params(next(ki), inchannel_Cl, nc)
                for nc in num_categories],
    }
    # Fuse per-task ResidualAdaptor weights along Cout (single widened conv).
    tse = [make_conv_bn_params(next(ki), inchannel_DE, inchannel_Cl)
           for _ in num_categories]
    params["TSE"] = (jnp.concatenate([w for w, _ in tse], axis=2),
                     jnp.concatenate([b for _, b in tse], axis=1))

    # layout: input is (N, L, C) == PyTorch (N, C, L).transpose(1, 2)
    x = jax.random.normal(jax.random.fold_in(key, 123),
                          (N, L, inchannel_SE), jnp.float32)

    fwd = jax.jit(lambda xx, pp: kdmts_ra_forward(xx, pp, tuple(strides_DE)))
    preds, shallow, deep = fwd(x, params)
    jax.block_until_ready(preds)
    jax.block_until_ready(shallow)
    jax.block_until_ready(deep)

    assert shallow.shape == (N, L, inchannel_DE)
    assert deep.shape == (N, L // 2, inchannel_Cl)
    for p, nc in zip(preds, num_categories):
        assert p.shape == (N, nc)

    print("KERNEL_OK")
</pallas_src>

<mosaic_0001>
module attributes {stable_mosaic.version = 11 : i64} {
  func.func @conv_bn_relu_kernel(%arg0: memref<2x18x8xf32, #tpu.memory_space<vmem>>, %arg1: memref<3x8x16xbf16, #tpu.memory_space<vmem>>, %arg2: memref<1x16xf32, #tpu.memory_space<vmem>>, %arg3: memref<2x8x16xf32, #tpu.memory_space<vmem>>) attributes {dimension_semantics = [], scalar_prefetch = 0 : i64, scratch_operands = 0 : i64, tpu.core_type = #tpu.core_type<tc>} {
    %c0 = arith.constant 0 : index
    %c0_0 = arith.constant 0 : index
    %c0_1 = arith.constant 0 : index
    %0 = tpu.strided_load %arg0[%c0, %c0_0, %c0_1] {strides = array<i32: 1, 2, 1>} : memref<2x18x8xf32, #tpu.memory_space<vmem>>, vector<2x8x8xf32>
    %1 = vector.shape_cast %0 : vector<2x8x8xf32> to vector<16x8xf32>
    %2 = arith.truncf %1 : vector<16x8xf32> to vector<16x8xbf16>
    %c0_2 = arith.constant 0 : index
    %c0_3 = arith.constant 0 : index
    %c0_4 = arith.constant 0 : index
    %3 = vector.load %arg1[%c0_2, %c0_3, %c0_4] : memref<3x8x16xbf16, #tpu.memory_space<vmem>>, vector<1x8x16xbf16>
    %4 = vector.shape_cast %3 : vector<1x8x16xbf16> to vector<8x16xbf16>
    %cst = arith.constant dense<0.000000e+00> : vector<16x16xf32>
    %5 = tpu.matmul %2, %4, %cst {dimension_numbers = #tpu.dot_dimension_numbers<[1], [0], [0], [1], [0, 0, 1, 1], [], []>} : vector<16x8xbf16>, vector<8x16xbf16>, vector<16x16xf32> -> vector<16x16xf32>
    %c0_5 = arith.constant 0 : index
    %c1 = arith.constant 1 : index
    %c0_6 = arith.constant 0 : index
    %6 = tpu.strided_load %arg0[%c0_5, %c1, %c0_6] {strides = array<i32: 1, 2, 1>} : memref<2x18x8xf32, #tpu.memory_space<vmem>>, vector<2x8x8xf32>
    %7 = vector.shape_cast %6 : vector<2x8x8xf32> to vector<16x8xf32>
    %8 = arith.truncf %7 : vector<16x8xf32> to vector<16x8xbf16>
    %c1_7 = arith.constant 1 : index
    %c0_8 = arith.constant 0 : index
    %c0_9 = arith.constant 0 : index
    %9 = vector.load %arg1[%c1_7, %c0_8, %c0_9] : memref<3x8x16xbf16, #tpu.memory_space<vmem>>, vector<1x8x16xbf16>
    %10 = vector.shape_cast %9 : vector<1x8x16xbf16> to vector<8x16xbf16>
    %cst_10 = arith.constant dense<0.000000e+00> : vector<16x16xf32>
    %11 = tpu.matmul %8, %10, %cst_10 {dimension_numbers = #tpu.dot_dimension_numbers<[1], [0], [0], [1], [0, 0, 1, 1], [], []>} : vector<16x8xbf16>, vector<8x16xbf16>, vector<16x16xf32> -> vector<16x16xf32>
    %12 = arith.addf %5, %11 : vector<16x16xf32>
    %c0_11 = arith.constant 0 : index
    %c2 = arith.constant 2 : index
    %c0_12 = arith.constant 0 : index
    %13 = tpu.strided_load %arg0[%c0_11, %c2, %c0_12] {strides = array<i32: 1, 2, 1>} : memref<2x18x8xf32, #tpu.memory_space<vmem>>, vector<2x8x8xf32>
    %14 = vector.shape_cast %13 : vector<2x8x8xf32> to vector<16x8xf32>
    %15 = arith.truncf %14 : vector<16x8xf32> to vector<16x8xbf16>
    %c2_13 = arith.constant 2 : index
    %c0_14 = arith.constant 0 : index
    %c0_15 = arith.constant 0 : index
    %16 = vector.load %arg1[%c2_13, %c0_14, %c0_15] : memref<3x8x16xbf16, #tpu.memory_space<vmem>>, vector<1x8x16xbf16>
    %17 = vector.shape_cast %16 : vector<1x8x16xbf16> to vector<8x16xbf16>
    %cst_16 = arith.constant dense<0.000000e+00> : vector<16x16xf32>
    %18 = tpu.matmul %15, %17, %cst_16 {dimension_numbers = #tpu.dot_dimension_numbers<[1], [0], [0], [1], [0, 0, 1, 1], [], []>} : vector<16x8xbf16>, vector<8x16xbf16>, vector<16x16xf32> -> vector<16x16xf32>
    %19 = arith.addf %12, %18 : vector<16x16xf32>
    %c0_17 = arith.constant 0 : index
    %c0_18 = arith.constant 0 : index
    %20 = vector.load %arg2[%c0_17, %c0_18] : memref<1x16xf32, #tpu.memory_space<vmem>>, vector<1x16xf32>
    %21 = vector.broadcast %20 : vector<1x16xf32> to vector<16x16xf32>
    %22 = arith.addf %19, %21 : vector<16x16xf32>
    %cst_19 = arith.constant 0.000000e+00 : f32
    %23 = vector.broadcast %cst_19 : f32 to vector<16x16xf32>
    %24 = arith.maximumf %22, %23 : vector<16x16xf32>
    %25 = vector.shape_cast %24 : vector<16x16xf32> to vector<2x8x16xf32>
    %c0_20 = arith.constant 0 : index
    %c0_21 = arith.constant 0 : index
    %c0_22 = arith.constant 0 : index
    %26 = vector.load %arg3[%c0_20, %c0_21, %c0_22] : memref<2x8x16xf32, #tpu.memory_space<vmem>>, vector<2x8x16xf32>
    tpu.vector_store %arg3[%c0_20, %c0_21, %c0_22], %25 {strides = array<i32>} : memref<2x8x16xf32, #tpu.memory_space<vmem>>, vector<2x8x16xf32>,
    return
  }
}

module attributes {stable_mosaic.version = 11 : i64} {
  func.func @conv_bn_relu_kernel(%arg0: memref<2x18x4xf32, #tpu.memory_space<vmem>>, %arg1: memref<3x4x8xbf16, #tpu.memory_space<vmem>>, %arg2: memref<1x8xf32, #tpu.memory_space<vmem>>, %arg3: memref<2x16x8xf32, #tpu.memory_space<vmem>>) attributes {dimension_semantics = [], scalar_prefetch = 0 : i64, scratch_operands = 0 : i64, tpu.core_type = #tpu.core_type<tc>} {
    %c0 = arith.constant 0 : index
    %c0_0 = arith.constant 0 : index
    %c0_1 = arith.constant 0 : index
    %0 = vector.load %arg0[%c0, %c0_0, %c0_1] : memref<2x18x4xf32, #tpu.memory_space<vmem>>, vector<2x16x4xf32>
    %1 = vector.shape_cast %0 : vector<2x16x4xf32> to vector<32x4xf32>
    %2 = arith.truncf %1 : vector<32x4xf32> to vector<32x4xbf16>
    %c0_2 = arith.constant 0 : index
    %c0_3 = arith.constant 0 : index
    %c0_4 = arith.constant 0 : index
    %3 = vector.load %arg1[%c0_2, %c0_3, %c0_4] : memref<3x4x8xbf16, #tpu.memory_space<vmem>>, vector<1x4x8xbf16>
    %4 = vector.shape_cast %3 : vector<1x4x8xbf16> to vector<4x8xbf16>
    %cst = arith.constant dense<0.000000e+00> : vector<32x8xf32>
    %5 = tpu.matmul %2, %4, %cst {dimension_numbers = #tpu.dot_dimension_numbers<[1], [0], [0], [1], [0, 0, 1, 1], [], []>} : vector<32x4xbf16>, vector<4x8xbf16>, vector<32x8xf32> -> vector<32x8xf32>
    %c0_5 = arith.constant 0 : index
    %c1 = arith.constant 1 : index
    %c0_6 = arith.constant 0 : index
    %6 = vector.load %arg0[%c0_5, %c1, %c0_6] : memref<2x18x4xf32, #tpu.memory_space<vmem>>, vector<2x16x4xf32>
    %7 = vector.shape_cast %6 : vector<2x16x4xf32> to vector<32x4xf32>
    %8 = arith.truncf %7 : vector<32x4xf32> to vector<32x4xbf16>
    %c1_7 = arith.constant 1 : index
    %c0_8 = arith.constant 0 : index
    %c0_9 = arith.constant 0 : index
    %9 = vector.load %arg1[%c1_7, %c0_8, %c0_9] : memref<3x4x8xbf16, #tpu.memory_space<vmem>>, vector<1x4x8xbf16>
    %10 = vector.shape_cast %9 : vector<1x4x8xbf16> to vector<4x8xbf16>
    %cst_10 = arith.constant dense<0.000000e+00> : vector<32x8xf32>
    %11 = tpu.matmul %8, %10, %cst_10 {dimension_numbers = #tpu.dot_dimension_numbers<[1], [0], [0], [1], [0, 0, 1, 1], [], []>} : vector<32x4xbf16>, vector<4x8xbf16>, vector<32x8xf32> -> vector<32x8xf32>
    %12 = arith.addf %5, %11 : vector<32x8xf32>
    %c0_11 = arith.constant 0 : index
    %c2 = arith.constant 2 : index
    %c0_12 = arith.constant 0 : index
    %13 = vector.load %arg0[%c0_11, %c2, %c0_12] : memref<2x18x4xf32, #tpu.memory_space<vmem>>, vector<2x16x4xf32>
    %14 = vector.shape_cast %13 : vector<2x16x4xf32> to vector<32x4xf32>
    %15 = arith.truncf %14 : vector<32x4xf32> to vector<32x4xbf16>
    %c2_13 = arith.constant 2 : index
    %c0_14 = arith.constant 0 : index
    %c0_15 = arith.constant 0 : index
    %16 = vector.load %arg1[%c2_13, %c0_14, %c0_15] : memref<3x4x8xbf16, #tpu.memory_space<vmem>>, vector<1x4x8xbf16>
    %17 = vector.shape_cast %16 : vector<1x4x8xbf16> to vector<4x8xbf16>
    %cst_16 = arith.constant dense<0.000000e+00> : vector<32x8xf32>
    %18 = tpu.matmul %15, %17, %cst_16 {dimension_numbers = #tpu.dot_dimension_numbers<[1], [0], [0], [1], [0, 0, 1, 1], [], []>} : vector<32x4xbf16>, vector<4x8xbf16>, vector<32x8xf32> -> vector<32x8xf32>
    %19 = arith.addf %12, %18 : vector<32x8xf32>
    %c0_17 = arith.constant 0 : index
    %c0_18 = arith.constant 0 : index
    %20 = vector.load %arg2[%c0_17, %c0_18] : memref<1x8xf32, #tpu.memory_space<vmem>>, vector<1x8xf32>
    %21 = vector.broadcast %20 : vector<1x8xf32> to vector<32x8xf32>
    %22 = arith.addf %19, %21 : vector<32x8xf32>
    %cst_19 = arith.constant 0.000000e+00 : f32
    %23 = vector.broadcast %cst_19 : f32 to vector<32x8xf32>
    %24 = arith.maximumf %22, %23 : vector<32x8xf32>
    %25 = vector.shape_cast %24 : vector<32x8xf32> to vector<2x16x8xf32>
    %c0_20 = arith.constant 0 : index
    %c0_21 = arith.constant 0 : index
    %c0_22 = arith.constant 0 : index
    %26 = vector.load %arg3[%c0_20, %c0_21, %c0_22] : memref<2x16x8xf32, #tpu.memory_space<vmem>>, vector<2x16x8xf32>
    tpu.vector_store %arg3[%c0_20, %c0_21, %c0_22], %25 {strides = array<i32>} : memref<2x16x8xf32, #tpu.memory_space<vmem>>, vector<2x16x8xf32>,
    return
  }
}

module attributes {stable_mosaic.version = 11 : i64} {
  func.func @head_kernel(%arg0: memref<2x18x8xf32, #tpu.memory_space<vmem>>, %arg1: memref<3x8x32xbf16, #tpu.memory_space<vmem>>, %arg2: memref<1x32xf32, #tpu.memory_space<vmem>>, %arg3: memref<2x8x16xf32, #tpu.memory_space<vmem>>, %arg4: memref<16x3xf32, #tpu.memory_space<vmem>>, %arg5: memref<1x3xf32, #tpu.memory_space<vmem>>, %arg6: memref<16x5xf32, #tpu.memory_space<vmem>>, %arg7: memref<1x5xf32, #tpu.memory_space<vmem>>, %arg8: memref<2x3xf32, #tpu.memory_space<vmem>>, %arg9: memref<2x5xf32, #tpu.memory_space<vmem>>) attributes {dimension_semantics = [], scalar_prefetch = 0 : i64, scratch_operands = 0 : i64, tpu.core_type = #tpu.core_type<tc>} {
    %c0 = arith.constant 0 : index
    %c0_0 = arith.constant 0 : index
    %c0_1 = arith.constant 0 : index
    %0 = tpu.strided_load %arg0[%c0, %c0_0, %c0_1] {strides = array<i32: 1, 2, 1>} : memref<2x18x8xf32, #tpu.memory_space<vmem>>, vector<2x8x8xf32>
    %1 = vector.shape_cast %0 : vector<2x8x8xf32> to vector<16x8xf32>
    %2 = arith.truncf %1 : vector<16x8xf32> to vector<16x8xbf16>
    %c0_2 = arith.constant 0 : index
    %c0_3 = arith.constant 0 : index
    %c0_4 = arith.constant 0 : index
    %3 = vector.load %arg1[%c0_2, %c0_3, %c0_4] : memref<3x8x32xbf16, #tpu.memory_space<vmem>>, vector<1x8x32xbf16>
    %4 = vector.shape_cast %3 : vector<1x8x32xbf16> to vector<8x32xbf16>
    %cst = arith.constant dense<0.000000e+00> : vector<16x32xf32>
    %5 = tpu.matmul %2, %4, %cst {dimension_numbers = #tpu.dot_dimension_numbers<[1], [0], [0], [1], [0, 0, 1, 1], [], []>} : vector<16x8xbf16>, vector<8x32xbf16>, vector<16x32xf32> -> vector<16x32xf32>
    %c0_5 = arith.constant 0 : index
    %c1 = arith.constant 1 : index
    %c0_6 = arith.constant 0 : index
    %6 = tpu.strided_load %arg0[%c0_5, %c1, %c0_6] {strides = array<i32: 1, 2, 1>} : memref<2x18x8xf32, #tpu.memory_space<vmem>>, vector<2x8x8xf32>
    %7 = vector.shape_cast %6 : vector<2x8x8xf32> to vector<16x8xf32>
    %8 = arith.truncf %7 : vector<16x8xf32> to vector<16x8xbf16>
    %c1_7 = arith.constant 1 : index
    %c0_8 = arith.constant 0 : index
    %c0_9 = arith.constant 0 : index
    %9 = vector.load %arg1[%c1_7, %c0_8, %c0_9] : memref<3x8x32xbf16, #tpu.memory_space<vmem>>, vector<1x8x32xbf16>
    %10 = vector.shape_cast %9 : vector<1x8x32xbf16> to vector<8x32xbf16>
    %cst_10 = arith.constant dense<0.000000e+00> : vector<16x32xf32>
    %11 = tpu.matmul %8, %10, %cst_10 {dimension_numbers = #tpu.dot_dimension_numbers<[1], [0], [0], [1], [0, 0, 1, 1], [], []>} : vector<16x8xbf16>, vector<8x32xbf16>, vector<16x32xf32> -> vector<16x32xf32>
    %12 = arith.addf %5, %11 : vector<16x32xf32>
    %c0_11 = arith.constant 0 : index
    %c2 = arith.constant 2 : index
    %c0_12 = arith.constant 0 : index
    %13 = tpu.strided_load %arg0[%c0_11, %c2, %c0_12] {strides = array<i32: 1, 2, 1>} : memref<2x18x8xf32, #tpu.memory_space<vmem>>, vector<2x8x8xf32>
    %14 = vector.shape_cast %13 : vector<2x8x8xf32> to vector<16x8xf32>
    %15 = arith.truncf %14 : vector<16x8xf32> to vector<16x8xbf16>
    %c2_13 = arith.constant 2 : index
    %c0_14 = arith.constant 0 : index
    %c0_15 = arith.constant 0 : index
    %16 = vector.load %arg1[%c2_13, %c0_14, %c0_15] : memref<3x8x32xbf16, #tpu.memory_space<vmem>>, vector<1x8x32xbf16>
    %17 = vector.shape_cast %16 : vector<1x8x32xbf16> to vector<8x32xbf16>
    %cst_16 = arith.constant dense<0.000000e+00> : vector<16x32xf32>
    %18 = tpu.matmul %15, %17, %cst_16 {dimension_numbers = #tpu.dot_dimension_numbers<[1], [0], [0], [1], [0, 0, 1, 1], [], []>} : vector<16x8xbf16>, vector<8x32xbf16>, vector<16x32xf32> -> vector<16x32xf32>
    %19 = arith.addf %12, %18 : vector<16x32xf32>
    %c0_17 = arith.constant 0 : index
    %c0_18 = arith.constant 0 : index
    %20 = vector.load %arg2[%c0_17, %c0_18] : memref<1x32xf32, #tpu.memory_space<vmem>>, vector<1x32xf32>
    %21 = vector.broadcast %20 : vector<1x32xf32> to vector<16x32xf32>
    %22 = arith.addf %19, %21 : vector<16x32xf32>
    %cst_19 = arith.constant 0.000000e+00 : f32
    %23 = vector.broadcast %cst_19 : f32 to vector<16x32xf32>
    %24 = arith.maximumf %22, %23 : vector<16x32xf32>
    %25 = vector.shape_cast %24 : vector<16x32xf32> to vector<2x8x32xf32>
    %cst_20 = arith.constant dense<0.000000e+00> : vector<2x32xf32>
    %26 = vector.multi_reduction <add>, %25, %cst_20 [1] : vector<2x8x32xf32> to vector<2x32xf32>
    %cst_21 = arith.constant 8.000000e+00 : f32
    %27 = vector.broadcast %cst_21 : f32 to vector<2x32xf32>
    %28 = arith.divf %26, %27 : vector<2x32xf32>
    %c0_22 = arith.constant 0 : index
    %c0_23 = arith.constant 0 : index
    %c0_24 = arith.constant 0 : index
    %29 = vector.load %arg3[%c0_22, %c0_23, %c0_24] : memref<2x8x16xf32, #tpu.memory_space<vmem>>, vector<2x8x16xf32>
    %cst_25 = arith.constant dense<0.000000e+00> : vector<2x16xf32>
    %30 = vector.multi_reduction <add>, %29, %cst_25 [1] : vector<2x8x16xf32> to vector<2x16xf32>
    %cst_26 = arith.constant 8.000000e+00 : f32
    %31 = vector.broadcast %cst_26 : f32 to vector<2x16xf32>
    %32 = arith.divf %30, %31 : vector<2x16xf32>
    %cst_27 = arith.constant 5.000000e-01 : f32
    %33 = vector.broadcast %cst_27 : f32 to vector<2x16xf32>
    %34 = arith.mulf %33, %32 : vector<2x16xf32>
    %35 = vector.extract_strided_slice %28 {offsets = [0, 0], sizes = [2, 16], strides = [1, 1]} : vector<2x32xf32> to vector<2x16xf32>
    %cst_28 = arith.constant 5.000000e-01 : f32
    %36 = vector.broadcast %cst_28 : f32 to vector<2x16xf32>
    %37 = arith.mulf %36, %35 : vector<2x16xf32>
    %38 = arith.addf %34, %37 : vector<2x16xf32>
    %c0_29 = arith.constant 0 : index
    %c0_30 = arith.constant 0 : index
    %39 = vector.load %arg4[%c0_29, %c0_30] : memref<16x3xf32, #tpu.memory_space<vmem>>, vector<16x3xf32>
    %cst_31 = arith.constant dense<0.000000e+00> : vector<2x3xf32>
    %40 = tpu.matmul %38, %39, %cst_31 {dimension_numbers = #tpu.dot_dimension_numbers<[1], [0], [0], [1], [0, 0, 1, 1], [], []>} : vector<2x16xf32>, vector<16x3xf32>, vector<2x3xf32> -> vector<2x3xf32>
    %c0_32 = arith.constant 0 : index
    %c0_33 = arith.constant 0 : index
    %41 = vector.load %arg5[%c0_32, %c0_33] : memref<1x3xf32, #tpu.memory_space<vmem>>, vector<1x3xf32>
    %42 = vector.broadcast %41 : vector<1x3xf32> to vector<2x3xf32>
    %43 = arith.addf %40, %42 : vector<2x3xf32>
    %c0_34 = arith.constant 0 : index
    %c0_35 = arith.constant 0 : index
    %44 = vector.load %arg8[%c0_34, %c0_35] : memref<2x3xf32, #tpu.memory_space<vmem>>, vector<2x3xf32>
    tpu.vector_store %arg8[%c0_34, %c0_35], %43 {strides = array<i32>} : memref<2x3xf32, #tpu.memory_space<vmem>>, vector<2x3xf32>,
    %cst_36 = arith.constant 5.000000e-01 : f32
    %45 = vector.broadcast %cst_36 : f32 to vector<2x16xf32>
    %46 = arith.mulf %45, %32 : vector<2x16xf32>
    %47 = vector.extract_strided_slice %28 {offsets = [0, 16], sizes = [2, 16], strides = [1, 1]} : vector<2x32xf32> to vector<2x16xf32>
    %cst_37 = arith.constant 5.000000e-01 : f32
    %48 = vector.broadcast %cst_37 : f32 to vector<2x16xf32>
    %49 = arith.mulf %48, %47 : vector<2x16xf32>
    %50 = arith.addf %46, %49 : vector<2x16xf32>
    %c0_38 = arith.constant 0 : index
    %c0_39 = arith.constant 0 : index
    %51 = vector.load %arg6[%c0_38, %c0_39] : memref<16x5xf32, #tpu.memory_space<vmem>>, vector<16x5xf32>
    %cst_40 = arith.constant dense<0.000000e+00> : vector<2x5xf32>
    %52 = tpu.matmul %50, %51, %cst_40 {dimension_numbers = #tpu.dot_dimension_numbers<[1], [0], [0], [1], [0, 0, 1, 1], [], []>} : vector<2x16xf32>, vector<16x5xf32>, vector<2x5xf32> -> vector<2x5xf32>
    %c0_41 = arith.constant 0 : index
    %c0_42 = arith.constant 0 : index
    %53 = vector.load %arg7[%c0_41, %c0_42] : memref<1x5xf32, #tpu.memory_space<vmem>>, vector<1x5xf32>
    %54 = vector.broadcast %53 : vector<1x5xf32> to vector<2x5xf32>
    %55 = arith.addf %52, %54 : vector<2x5xf32>
    %c0_43 = arith.constant 0 : index
    %c0_44 = arith.constant 0 : index
    %56 = vector.load %arg9[%c0_43, %c0_44] : memref<2x5xf32, #tpu.memory_space<vmem>>, vector<2x5xf32>
    tpu.vector_store %arg9[%c0_43, %c0_44], %55 {strides = array<i32>} : memref<2x5xf32, #tpu.memory_space<vmem>>, vector<2x5xf32>,
    return
  }
}

</mosaic_0001>

<llo_original>
// kernel: _lambda_.3
$region0: #{_lambda_.3}
  #allocation0 [shape = 'u32[]', space=smem, size = 0x4, offset = 0x4, fixed_abs, tag = 'smem constant byte address 0x4 - core index']
  #allocation1 [shape = 'u32[72,128]{1,0:T(1,128)}', space=vmem, size = 0x9000, scoped, tag = 'internal scratch']
  %s0 = inlined_call_operand.vmem [shape: f32[2,18,4], index: 0, kind: input, shape index: {}]
  %s1 = inlined_call_operand.vmem [shape: bf16[3,4,8], index: 1, kind: input, shape index: {}]
  %s2 = inlined_call_operand.vmem [shape: f32[1,8], index: 2, kind: input, shape index: {}]
  %s3 = inlined_call_operand.vmem [shape: f32[2,16,8], index: 3, kind: output, shape index: {}]
  %s4 = sld [smem:[#allocation0]]
  $region22: #{_lambda_.3} parent=0
    _
  %s6 = ssub.s32 1, %s4
  %s7 = scalar_select 0, %s6, %s4
  // Predicated region
  $region2: #{_lambda_.3} parent=0 // pred_check
    _
  $region3: #{_lambda_.3} parent=0 // pred_check_branch
    %9 = sbr.rel (0) target = $region5
  $region4: #{_lambda_.3} parent=0 // pred_region
    _
  $region5: #{_lambda_.3} parent=0 // pred_fallthru
    _
  // Predicated region
  $region6: #{_lambda_.3} parent=0 // pred_check
    _
  $region7: #{_lambda_.3} parent=0 // pred_check_branch
    %11 = sbr.rel (0) target = $region9
  $region8: #{_lambda_.3} parent=0 // pred_region
    _
  $region9: #{_lambda_.3} parent=0 // pred_fallthru
    _
  // Predicated region
  $region10: #{_lambda_.3} parent=0 // pred_check
    _
  $region11: #{_lambda_.3} parent=0 // pred_check_branch
    %13 = sbr.rel (0) target = $region13
  $region12: #{_lambda_.3} parent=0 // pred_region
    _
  $region13: #{_lambda_.3} parent=0 // pred_fallthru
    _
  %v15 = vld [vmem:[%s0] sm:$0xff]
  %v16 = vld [vmem:[%s0 + $0x8] sm:$0xff]
  %v17 = vld [vmem:[%s0 + $0x18] sm:$0xff]
  %v18 = vld [vmem:[%s0 + $0x20] sm:$0xff]
  %v19 = vpack.c.bf16 %v16, %v15
  %v20 = vpack.c.bf16 %v18, %v17
  %v21 = vld [vmem:[%s1] sm:$0x3]
  %v22 = vld [vmem:[%s0 + $0x1] sm:$0xff]
  %v23 = vld [vmem:[%s0 + $0x9] sm:$0xff]
  %v24 = vld [vmem:[%s0 + $0x19] sm:$0xff]
  %v25 = vld [vmem:[%s0 + $0x21] sm:$0xff]
  %v26 = vpack.c.bf16 %v23, %v22
  %v27 = vpack.c.bf16 %v25, %v24
  %s28 = scalar_lea.vmem %s1, 2
  %v29 = vld [vmem:[%s28] sm:$0x3]
  %vm30 = vcmask 31744
  %v32 = vsel %vm30, %v26, 0
  %v35 = vsel %vm30, %v27, 0
  %vm37 = vcmask 1041408
  %v39 = vsel %vm37, %v29, 0
  %41 = vmatpush.bf16.msra.mxu0 0
  %42 = vmatpush.bf16.msra.mxu0 0
  %43 = vmatpush.bf16.msra.mxu0 0
  %44 = vmatpush.bf16.msra.mxu0 0
  %45 = vmatpush.bf16.msra.mxu0 0
  %46 = vmatpush.bf16.msra.mxu0 0
  %47 = vmatpush.bf16.msra.mxu0 0
  %48 = vmatpush.bf16.msra.mxu0 %v39
  %49 = vmatmul.bf16.gmra.mxu0 %v32
  %v50 = vpop.f32.mrf.mxu0
  %v51 = vadd.f32 0.0, %v50
  %v52 = vpop.f32.mrf.mxu0
  %v53 = vadd.f32 0.0, %v52
  %54 = vmatmul.bf16.gmra.mxu0 %v35
  %v55 = vpop.f32.mrf.mxu0
  %v56 = vadd.f32 0.0, %v55
  %v57 = vpop.f32.mrf.mxu0
  %v58 = vadd.f32 0.0, %v57
  %59 = vdwg.mxu0
  %v61 = vsel %vm30, %v19, 0
  %v64 = vsel %vm30, %v20, 0
  %v67 = vsel %vm37, %v21, 0
  %69 = vmatpush.bf16.msra.mxu0 0
  %70 = vmatpush.bf16.msra.mxu0 0
  %71 = vmatpush.bf16.msra.mxu0 0
  %72 = vmatpush.bf16.msra.mxu0 0
  %73 = vmatpush.bf16.msra.mxu0 0
  %74 = vmatpush.bf16.msra.mxu0 0
  %75 = vmatpush.bf16.msra.mxu0 0
  %76 = vmatpush.bf16.msra.mxu0 %v67
  %77 = vmatmul.bf16.gmra.mxu0 %v61
  %v78 = vpop.f32.mrf.mxu0
  %v79 = vadd.f32 %v51, %v78
  %v80 = vpop.f32.mrf.mxu0
  %v81 = vadd.f32 %v53, %v80
  %82 = vmatmul.bf16.gmra.mxu0 %v64
  %v83 = vpop.f32.mrf.mxu0
  %v84 = vadd.f32 %v56, %v83
  %v85 = vpop.f32.mrf.mxu0
  %v86 = vadd.f32 %v58, %v85
  %87 = vdwg.mxu0
  %v88 = vld [vmem:[%s0 + $0x2] sm:$0xff]
  %v89 = vld [vmem:[%s0 + $0xa] sm:$0xff]
  %v90 = vld [vmem:[%s0 + $0x1a] sm:$0xff]
  %v91 = vld [vmem:[%s0 + $0x22] sm:$0xff]
  %v92 = vpack.c.bf16 %v89, %v88
  %v93 = vpack.c.bf16 %v91, %v90
  %s94 = scalar_lea.vmem %s1, 4
  %v95 = vld [vmem:[%s94] sm:$0x3]
  %v97 = vsel %vm30, %v92, 0
  %v100 = vsel %vm30, %v93, 0
  %v103 = vsel %vm37, %v95, 0
  %105 = vmatpush.bf16.msra.mxu0 0
  %106 = vmatpush.bf16.msra.mxu0 0
  %107 = vmatpush.bf16.msra.mxu0 0
  %108 = vmatpush.bf16.msra.mxu0 0
  %109 = vmatpush.bf16.msra.mxu0 0
  %110 = vmatpush.bf16.msra.mxu0 0
  %111 = vmatpush.bf16.msra.mxu0 0
  %112 = vmatpush.bf16.msra.mxu0 %v103
  %113 = vmatmul.bf16.gmra.mxu0 %v97
  %v114 = vpop.f32.mrf.mxu0
  %v115 = vadd.f32 0.0, %v114
  %v116 = vpop.f32.mrf.mxu0
  %v117 = vadd.f32 0.0, %v116
  %118 = vmatmul.bf16.gmra.mxu0 %v100
  %v119 = vpop.f32.mrf.mxu0
  %v120 = vadd.f32 0.0, %v119
  %v121 = vpop.f32.mrf.mxu0
  %v122 = vadd.f32 0.0, %v121
  %123 = vdwg.mxu0
  %v124 = vadd.f32 %v79, %v115
  %v125 = vadd.f32 %v81, %v117
  %v126 = vadd.f32 %v84, %v120
  %v127 = vadd.f32 %v86, %v122
  %v128 = vld [vmem:[%s2] sm:$0x1]
  %v130 = vperm.slane %v128, 0
  %v132 = vadd.f32 %v124, %v130
  %v133 = vadd.f32 %v125, %v130
  %v134 = vadd.f32 %v126, %v130
  %v135 = vadd.f32 %v127, %v130
  %v136 = vmax.f32 %v132, 0.0
  %v137 = vmax.f32 %v133, 0.0
  %v138 = vmax.f32 %v134, 0.0
  %v139 = vmax.f32 %v135, 0.0
  %vm140 = vcmask 64512
  %141 = vst.msk [vmem:[%s3] sm:$0xff] %vm140, %v136
  %142 = vst.msk [vmem:[%s3 + $0x8] sm:$0xff] %vm140, %v137
  %143 = vst.msk [vmem:[%s3 + $0x10] sm:$0xff] %vm140, %v138
  %144 = vst.msk [vmem:[%s3 + $0x18] sm:$0xff] %vm140, %v139
  // Predicated region
  $region14: #{_lambda_.3} parent=0 // pred_check
    _
  $region15: #{_lambda_.3} parent=0 // pred_check_branch
    %146 = sbr.rel (0) target = $region17
  $region16: #{_lambda_.3} parent=0 // pred_region
    _
  $region17: #{_lambda_.3} parent=0 // pred_fallthru
    _
  // Predicated region
  $region18: #{_lambda_.3} parent=0 // pred_check
    _
  $region19: #{_lambda_.3} parent=0 // pred_check_branch
    %148 = sbr.rel (0) target = $region21
  $region20: #{_lambda_.3} parent=0 // pred_region
    _
  $region21: #{_lambda_.3} parent=0 // pred_fallthru
    _

// kernel: _lambda_.4
$region0: #{_lambda_.4}
  #allocation0 [shape = 'u32[]', space=smem, size = 0x4, offset = 0x4, fixed_abs, tag = 'smem constant byte address 0x4 - core index']
  #allocation1 [shape = 'u32[72,128]{1,0:T(1,128)}', space=vmem, size = 0x9000, scoped, tag = 'internal scratch']
  %s0 = inlined_call_operand.vmem [shape: f32[2,18,8], index: 0, kind: input, shape index: {}]
  %s1 = inlined_call_operand.vmem [shape: bf16[3,8,16], index: 1, kind: input, shape index: {}]
  %s2 = inlined_call_operand.vmem [shape: f32[1,16], index: 2, kind: input, shape index: {}]
  %s3 = inlined_call_operand.vmem [shape: f32[2,8,16], index: 3, kind: output, shape index: {}]
  %s4 = sld [smem:[#allocation0]]
  $region22: #{_lambda_.4} parent=0
    _
  %s6 = ssub.s32 1, %s4
  %s7 = scalar_select 0, %s6, %s4
  // Predicated region
  $region2: #{_lambda_.4} parent=0 // pred_check
    _
  $region3: #{_lambda_.4} parent=0 // pred_check_branch
    %9 = sbr.rel (0) target = $region5
  $region4: #{_lambda_.4} parent=0 // pred_region
    _
  $region5: #{_lambda_.4} parent=0 // pred_fallthru
    _
  // Predicated region
  $region6: #{_lambda_.4} parent=0 // pred_check
    _
  $region7: #{_lambda_.4} parent=0 // pred_check_branch
    %11 = sbr.rel (0) target = $region9
  $region8: #{_lambda_.4} parent=0 // pred_region
    _
  $region9: #{_lambda_.4} parent=0 // pred_fallthru
    _
  // Predicated region
  $region10: #{_lambda_.4} parent=0 // pred_check
    _
  $region11: #{_lambda_.4} parent=0 // pred_check_branch
    %13 = sbr.rel (0) target = $region13
  $region12: #{_lambda_.4} parent=0 // pred_region
    _
  $region13: #{_lambda_.4} parent=0 // pred_fallthru
    _
  %v15 = vld [vmem:[%s0] ss:$2 sm:$0xff]
  %s16 = scalar_lea.vmem %s0, 24
  %v17 = vld [vmem:[%s16] ss:$2 sm:$0xff]
  %v18 = vpack.c.bf16 %v17, %v15
  %v19 = vld [vmem:[%s1] sm:$0xf]
  %s20 = scalar_lea.vmem %s0, 1
  %v21 = vld [vmem:[%s20] ss:$2 sm:$0xff]
  %s22 = scalar_lea.vmem %s0, 25
  %v23 = vld [vmem:[%s22] ss:$2 sm:$0xff]
  %v24 = vpack.c.bf16 %v23, %v21
  %s25 = scalar_lea.vmem %s1, 4
  %v26 = vld [vmem:[%s25] sm:$0xf]
  %vm27 = vcmask 64512
  %v29 = vsel %vm27, %v24, 0
  %vm31 = vcmask 1043456
  %v33 = vsel %vm31, %v26, 0
  %35 = vmatpush.bf16.msra.mxu0 0
  %36 = vmatpush.bf16.msra.mxu0 0
  %37 = vmatpush.bf16.msra.mxu0 0
  %38 = vmatpush.bf16.msra.mxu0 0
  %39 = vmatpush.bf16.msra.mxu0 0
  %40 = vmatpush.bf16.msra.mxu0 0
  %41 = vmatpush.bf16.msra.mxu0 0
  %42 = vmatpush.bf16.msra.mxu0 %v33
  %43 = vmatmul.bf16.gmra.mxu0 %v29
  %v44 = vpop.f32.mrf.mxu0
  %v45 = vadd.f32 0.0, %v44
  %v46 = vpop.f32.mrf.mxu0
  %v47 = vadd.f32 0.0, %v46
  %48 = vdwg.mxu0
  %v50 = vsel %vm27, %v18, 0
  %v53 = vsel %vm31, %v19, 0
  %55 = vmatpush.bf16.msra.mxu0 0
  %56 = vmatpush.bf16.msra.mxu0 0
  %57 = vmatpush.bf16.msra.mxu0 0
  %58 = vmatpush.bf16.msra.mxu0 0
  %59 = vmatpush.bf16.msra.mxu0 0
  %60 = vmatpush.bf16.msra.mxu0 0
  %61 = vmatpush.bf16.msra.mxu0 0
  %62 = vmatpush.bf16.msra.mxu0 %v53
  %63 = vmatmul.bf16.gmra.mxu0 %v50
  %v64 = vpop.f32.mrf.mxu0
  %v65 = vadd.f32 %v45, %v64
  %v66 = vpop.f32.mrf.mxu0
  %v67 = vadd.f32 %v47, %v66
  %68 = vdwg.mxu0
  %s69 = scalar_lea.vmem %s0, 2
  %v70 = vld [vmem:[%s69] ss:$2 sm:$0xff]
  %s71 = scalar_lea.vmem %s0, 26
  %v72 = vld [vmem:[%s71] ss:$2 sm:$0xff]
  %v73 = vpack.c.bf16 %v72, %v70
  %s74 = scalar_lea.vmem %s1, 8
  %v75 = vld [vmem:[%s74] sm:$0xf]
  %v77 = vsel %vm27, %v73, 0
  %v80 = vsel %vm31, %v75, 0
  %82 = vmatpush.bf16.msra.mxu0 0
  %83 = vmatpush.bf16.msra.mxu0 0
  %84 = vmatpush.bf16.msra.mxu0 0
  %85 = vmatpush.bf16.msra.mxu0 0
  %86 = vmatpush.bf16.msra.mxu0 0
  %87 = vmatpush.bf16.msra.mxu0 0
  %88 = vmatpush.bf16.msra.mxu0 0
  %89 = vmatpush.bf16.msra.mxu0 %v80
  %90 = vmatmul.bf16.gmra.mxu0 %v77
  %v91 = vpop.f32.mrf.mxu0
  %v92 = vadd.f32 0.0, %v91
  %v93 = vpop.f32.mrf.mxu0
  %v94 = vadd.f32 0.0, %v93
  %95 = vdwg.mxu0
  %v96 = vadd.f32 %v65, %v92
  %v97 = vadd.f32 %v67, %v94
  %v98 = vld [vmem:[%s2] sm:$0x1]
  %v100 = vperm.slane %v98, 0
  %v102 = vadd.f32 %v96, %v100
  %v103 = vadd.f32 %v97, %v100
  %v104 = vmax.f32 %v102, 0.0
  %v105 = vmax.f32 %v103, 0.0
  %vm106 = vcmask 130048
  %107 = vst.msk [vmem:[%s3] sm:$0xff] %vm106, %v104
  %108 = vst.msk [vmem:[%s3 + $0x8] sm:$0xff] %vm106, %v105
  // Predicated region
  $region14: #{_lambda_.4} parent=0 // pred_check
    _
  $region15: #{_lambda_.4} parent=0 // pred_check_branch
    %110 = sbr.rel (0) target = $region17
  $region16: #{_lambda_.4} parent=0 // pred_region
    _
  $region17: #{_lambda_.4} parent=0 // pred_fallthru
    _
  // Predicated region
  $region18: #{_lambda_.4} parent=0 // pred_check
    _
  $region19: #{_lambda_.4} parent=0 // pred_check_branch
    %112 = sbr.rel (0) target = $region21
  $region20: #{_lambda_.4} parent=0 // pred_region
    _
  $region21: #{_lambda_.4} parent=0 // pred_fallthru
    _

// kernel: _lambda_.5
$region0: #{_lambda_.5}
  #allocation0 [shape = 'u32[]', space=smem, size = 0x4, offset = 0x4, fixed_abs, tag = 'smem constant byte address 0x4 - core index']
  #allocation1 [shape = 'u32[72,128]{1,0:T(1,128)}', space=vmem, size = 0x9000, scoped, tag = 'internal scratch']
  %s0 = inlined_call_operand.vmem [shape: f32[2,18,8], index: 0, kind: input, shape index: {}]
  %s1 = inlined_call_operand.vmem [shape: bf16[3,8,32], index: 1, kind: input, shape index: {}]
  %s2 = inlined_call_operand.vmem [shape: f32[1,32], index: 2, kind: input, shape index: {}]
  %s3 = inlined_call_operand.vmem [shape: f32[2,8,16], index: 3, kind: input, shape index: {}]
  %s4 = inlined_call_operand.vmem [shape: f32[16,3], index: 4, kind: input, shape index: {}]
  %s5 = inlined_call_operand.vmem [shape: f32[1,3], index: 5, kind: input, shape index: {}]
  %s6 = inlined_call_operand.vmem [shape: f32[16,5], index: 6, kind: input, shape index: {}]
  %s7 = inlined_call_operand.vmem [shape: f32[1,5], index: 7, kind: input, shape index: {}]
  %s8 = inlined_call_operand.hbm [shape: f32[2,3], index: 8, kind: output, shape index: {0}]
  %s9 = inlined_call_operand.hbm [shape: f32[2,5], index: 9, kind: output, shape index: {1}]
  %10 = xla_tuple %s8, %s9
  %s11 = sld [smem:[#allocation0]]
  $region50: #{_lambda_.5} parent=0
    _
  %s13 = ssub.s32 1, %s11
  %s14 = scalar_select 0, %s13, %s11
  $region1: #{_lambda_.5} parent=0
    #allocation2 [shape = 'u8[1024]{0}', space=vmem, size = 0x400, scoped, tag = 'output window, operand 0, single buffered']
    #allocation3 [shape = 's32[1]{0}', space=sflag, size = 0x4, scoped, tag = 'scoped memory for _lambda_.5']
    #allocation4 [shape = 'u8[1024]{0}', space=vmem, size = 0x400, scoped, tag = 'output window, operand 1, single buffered']
    #allocation5 [shape = 's32[1]{0}', space=sflag, size = 0x4, scoped, tag = 'scoped memory for _lambda_.5']
    %15 = vsyncpa [#allocation3], 0
    %16 = vsyncpa [#allocation5], 0
    // Predicated region
    $region2: #{_lambda_.5} parent=1 // pred_check
      _
    $region3: #{_lambda_.5} parent=1 // pred_check_branch
      %18 = sbr.rel (0) target = $region5
    $region4: #{_lambda_.5} parent=1 // pred_region
      _
    $region5: #{_lambda_.5} parent=1 // pred_fallthru
      _
    // Predicated region
    $region6: #{_lambda_.5} parent=1 // pred_check
      _
    $region7: #{_lambda_.5} parent=1 // pred_check_branch
      %20 = sbr.rel (0) target = $region9
    $region8: #{_lambda_.5} parent=1 // pred_region
      _
    $region9: #{_lambda_.5} parent=1 // pred_fallthru
      _
    // Predicated region
    $region10: #{_lambda_.5} parent=1 // pred_check
      _
    $region11: #{_lambda_.5} parent=1 // pred_check_branch
      %22 = sbr.rel (0) target = $region13
    $region12: #{_lambda_.5} parent=1 // pred_region
      _
    $region13: #{_lambda_.5} parent=1 // pred_fallthru
      _
    // Predicated region
    $region14: #{_lambda_.5} parent=1 // pred_check
      _
    $region15: #{_lambda_.5} parent=1 // pred_check_branch
      %24 = sbr.rel (0) target = $region17
    $region16: #{_lambda_.5} parent=1 // pred_region
      _
    $region17: #{_lambda_.5} parent=1 // pred_fallthru
      _
    // Predicated region
    $region18: #{_lambda_.5} parent=1 // pred_check
      _
    $region19: #{_lambda_.5} parent=1 // pred_check_branch
      %26 = sbr.rel (0) target = $region21
    $region20: #{_lambda_.5} parent=1 // pred_region
      _
    $region21: #{_lambda_.5} parent=1 // pred_fallthru
      _
    // Predicated region
    $region22: #{_lambda_.5} parent=1 // pred_check
      _
    $region23: #{_lambda_.5} parent=1 // pred_check_branch
      %28 = sbr.rel (0) target = $region25
    $region24: #{_lambda_.5} parent=1 // pred_region
      _
    $region25: #{_lambda_.5} parent=1 // pred_fallthru
      _
    // Predicated region
    $region26: #{_lambda_.5} parent=1 // pred_check
      _
    $region27: #{_lambda_.5} parent=1 // pred_check_branch
      %30 = sbr.rel (0) target = $region29
    $region28: #{_lambda_.5} parent=1 // pred_region
      _
    $region29: #{_lambda_.5} parent=1 // pred_fallthru
      _
    // Predicated region
    $region30: #{_lambda_.5} parent=1 // pred_check
      _
    $region31: #{_lambda_.5} parent=1 // pred_check_branch
      %32 = sbr.rel (0) target = $region33
    $region32: #{_lambda_.5} parent=1 // pred_region
      _
    $region33: #{_lambda_.5} parent=1 // pred_fallthru
      _
    %v34 = vld [vmem:[%s0] ss:$2 sm:$0xff]
    %s35 = scalar_lea.vmem %s0, 24
    %v36 = vld [vmem:[%s35] ss:$2 sm:$0xff]
    %v37 = vpack.c.bf16 %v36, %v34
    %v38 = vld [vmem:[%s1] sm:$0xf]
    %s39 = scalar_lea.vmem %s0, 1
    %v40 = vld [vmem:[%s39] ss:$2 sm:$0xff]
    %s41 = scalar_lea.vmem %s0, 25
    %v42 = vld [vmem:[%s41] ss:$2 sm:$0xff]
    %v43 = vpack.c.bf16 %v42, %v40
    %s44 = scalar_lea.vmem %s1, 4
    %v45 = vld [vmem:[%s44] sm:$0xf]
    %vm46 = vcmask 64512
    %v48 = vsel %vm46, %v43, 0
    %vm50 = vcmask 1043456
    %v52 = vsel %vm50, %v45, 0
    %54 = vmatpush.bf16.msra.mxu0 0
    %55 = vmatpush.bf16.msra.mxu0 0
    %56 = vmatpush.bf16.msra.mxu0 0
    %57 = vmatpush.bf16.msra.mxu0 0
    %58 = vmatpush.bf16.msra.mxu0 0
    %59 = vmatpush.bf16.msra.mxu0 0
    %60 = vmatpush.bf16.msra.mxu0 0
    %61 = vmatpush.bf16.msra.mxu0 %v52
    %62 = vmatmul.bf16.gmra.mxu0 %v48
    %v63 = vpop.f32.mrf.mxu0
    %v64 = vadd.f32 0.0, %v63
    %v65 = vpop.f32.mrf.mxu0
    %v66 = vadd.f32 0.0, %v65
    %67 = vdwg.mxu0
    %v69 = vsel %vm46, %v37, 0
    %v72 = vsel %vm50, %v38, 0
    %74 = vmatpush.bf16.msra.mxu0 0
    %75 = vmatpush.bf16.msra.mxu0 0
    %76 = vmatpush.bf16.msra.mxu0 0
    %77 = vmatpush.bf16.msra.mxu0 0
    %78 = vmatpush.bf16.msra.mxu0 0
    %79 = vmatpush.bf16.msra.mxu0 0
    %80 = vmatpush.bf16.msra.mxu0 0
    %81 = vmatpush.bf16.msra.mxu0 %v72
    %82 = vmatmul.bf16.gmra.mxu0 %v69
    %v83 = vpop.f32.mrf.mxu0
    %v84 = vadd.f32 %v64, %v83
    %v85 = vpop.f32.mrf.mxu0
    %v86 = vadd.f32 %v66, %v85
    %87 = vdwg.mxu0
    %s88 = scalar_lea.vmem %s0, 2
    %v89 = vld [vmem:[%s88] ss:$2 sm:$0xff]
    %s90 = scalar_lea.vmem %s0, 26
    %v91 = vld [vmem:[%s90] ss:$2 sm:$0xff]
    %v92 = vpack.c.bf16 %v91, %v89
    %s93 = scalar_lea.vmem %s1, 8
    %v94 = vld [vmem:[%s93] sm:$0xf]
    %v96 = vsel %vm46, %v92, 0
    %v99 = vsel %vm50, %v94, 0
    %101 = vmatpush.bf16.msra.mxu0 0
    %102 = vmatpush.bf16.msra.mxu0 0
    %103 = vmatpush.bf16.msra.mxu0 0
    %104 = vmatpush.bf16.msra.mxu0 0
    %105 = vmatpush.bf16.msra.mxu0 0
    %106 = vmatpush.bf16.msra.mxu0 0
    %107 = vmatpush.bf16.msra.mxu0 0
    %108 = vmatpush.bf16.msra.mxu0 %v99
    %109 = vmatmul.bf16.gmra.mxu0 %v96
    %v110 = vpop.f32.mrf.mxu0
    %v111 = vadd.f32 0.0, %v110
    %v112 = vpop.f32.mrf.mxu0
    %v113 = vadd.f32 0.0, %v112
    %114 = vdwg.mxu0
    %v115 = vadd.f32 %v84, %v111
    %v116 = vadd.f32 %v86, %v113
    %v117 = vld [vmem:[%s2] sm:$0x1]
    %v119 = vperm.slane %v117, 0
    %v121 = vadd.f32 %v115, %v119
    %v122 = vadd.f32 %v116, %v119
    %v123 = vmax.f32 %v121, 0.0
    %v124 = vmax.f32 %v122, 0.0
    %vm125 = vcmask 261120
    %v126 = vsel %vm125, %v123, 0.0
    %v127 = vrot.slane %v126, 4
    %v128 = vadd.f32 %v126, %v127
    %v129 = vrot.slane %v128, 2
    %v130 = vadd.f32 %v128, %v129
    %v131 = vrot.slane %v130, 1
    %v132 = vadd.f32 %v130, %v131
    %v133 = vsel %vm125, %v124, 0.0
    %v134 = vrot.slane %v133, 4
    %v135 = vadd.f32 %v133, %v134
    %v136 = vrot.slane %v135, 2
    %v137 = vadd.f32 %v135, %v136
    %v138 = vrot.slane %v137, 1
    %v139 = vadd.f32 %v137, %v138
    %v140 = vrcp.pop 8.0
    %v141 = vmul.f32 8.0, %v140
    %v142 = vsub.f32 1.0, %v141
    %v143 = vmul.f32 %v140, %v142
    %v144 = vadd.f32 %v140, %v143
    %vm145 = vweird.f32 %v140
    %v146 = vsel %vm145, %v140, %v144
    %v147 = vmul.f32 %v132, %v146
    %v148 = vmul.f32 %v139, %v146
    %v149 = vld [vmem:[%s3] sm:$0xff]
    %v150 = vld [vmem:[%s3 + $0x8] sm:$0xff]
    %vm151 = vcmask 130048
    %v152 = vsel %vm151, %v149, 0.0
    %v153 = vrot.slane %v152, 4
    %v154 = vadd.f32 %v152, %v153
    %v155 = vrot.slane %v154, 2
    %v156 = vadd.f32 %v154, %v155
    %v157 = vrot.slane %v156, 1
    %v158 = vadd.f32 %v156, %v157
    %v159 = vsel %vm151, %v150, 0.0
    %v160 = vrot.slane %v159, 4
    %v161 = vadd.f32 %v159, %v160
    %v162 = vrot.slane %v161, 2
    %v163 = vadd.f32 %v161, %v162
    %v164 = vrot.slane %v163, 1
    %v165 = vadd.f32 %v163, %v164
    %v166 = vmul.f32 %v158, %v146
    %v167 = vmul.f32 %v165, %v146
    %v168 = vmul.f32 %v166, 0.5
    %v169 = vmul.f32 %v167, 0.5
    %v170 = vmul.f32 %v147, 0.5
    %v171 = vmul.f32 %v148, 0.5
    %v172 = vadd.f32 %v168, %v170
    %v173 = vadd.f32 %v169, %v171
    %v174 = vld [vmem:[%s4] sm:$0xff]
    %v175 = vld [vmem:[%s4 + $0x8] sm:$0xff]
    %v176 = vld [vmem:[%s5] sm:$0x1]
    %v178 = vperm.slane %v176, 0
    %vm182 = vcmask 1041409
    %v183 = vsel %vm182, %v173, %v172
    %v184 = vsel %vm151, %v183, 0
    %186 = vmatpush.msra.mxu0 0.0
    %187 = vmatpush.msra.mxu0 0.0
    %188 = vmatpush.msra.mxu0 0.0
    %189 = vmatpush.msra.mxu0 0.0
    %190 = vmatpush.msra.mxu0 0.0
    %191 = vmatpush.msra.mxu0 0.0
    %192 = vmatpush.msra.mxu0 0.0
    %193 = vmatpush.msra.mxu0 0.0
    %194 = vmatpush.msra.mxu0 0.0
    %195 = vmatpush.msra.mxu0 0.0
    %196 = vmatpush.msra.mxu0 0.0
    %197 = vmatpush.msra.mxu0 0.0
    %198 = vmatpush.msra.mxu0 0.0
    %199 = vmatpush.msra.mxu0 0.0
    %200 = vmatpush.msra.mxu0 %v175
    %201 = vmatpush.msra.mxu0 %v174
    %202 = vmatmul.f32.gmra.mxu0 %v184
    %v203 = vpop.f32.mrf.mxu0
    %v204 = vadd.f32 %v178, %v203
    %205 = vdwg.mxu0
    %vm206 = vcmask 17408
    %207 = vst.msk [vmem:[#allocation2] sm:$0x3] %vm206, %v204
    %210 = vrot.lane.b32.xlu0 %v170, 112
    %v211 = vpop.permute.xlu0 %210
    %212 = vrot.lane.b32.xlu0 %v171, 112
    %v213 = vpop.permute.xlu0 %212
    %v216 = vadd.f32 %v168, %v211
    %v217 = vadd.f32 %v169, %v213
    %v218 = vld [vmem:[%s6] sm:$0xff]
    %v219 = vld [vmem:[%s6 + $0x8] sm:$0xff]
    %v220 = vld [vmem:[%s7] sm:$0x1]
    %v222 = vperm.slane %v220, 0
    %v226 = vrot.slane %v217, 7
    %v227 = vsel %vm182, %v226, %v216
    %v228 = vsel %vm151, %v227, 0
    %230 = vmatpush.msra.mxu0 0.0
    %231 = vmatpush.msra.mxu0 0.0
    %232 = vmatpush.msra.mxu0 0.0
    %233 = vmatpush.msra.mxu0 0.0
    %234 = vmatpush.msra.mxu0 0.0
    %235 = vmatpush.msra.mxu0 0.0
    %236 = vmatpush.msra.mxu0 0.0
    %237 = vmatpush.msra.mxu0 0.0
    %238 = vmatpush.msra.mxu0 0.0
    %239 = vmatpush.msra.mxu0 0.0
    %240 = vmatpush.msra.mxu0 0.0
    %241 = vmatpush.msra.mxu0 0.0
    %242 = vmatpush.msra.mxu0 0.0
    %243 = vmatpush.msra.mxu0 0.0
    %244 = vmatpush.msra.mxu0 %v219
    %245 = vmatpush.msra.mxu0 %v218
    %246 = vmatmul.f32.gmra.mxu0 %v228
    %v247 = vpop.f32.mrf.mxu0
    %v248 = vadd.f32 %v222, %v247
    %249 = vdwg.mxu0
    %vm250 = vcmask 33792
    %251 = vst.msk [vmem:[#allocation4] sm:$0x3] %vm250, %v248
    // Predicated region
    $region34: #{_lambda_.5} parent=1 // pred_check
      _
    $region35: #{_lambda_.5} parent=1 // pred_check_branch
      %253 = sbr.rel (0) target = $region37
    $region36: #{_lambda_.5} parent=1 // pred_region
      %255 = vsyncadd [#allocation3], 0
      %s257 = sshll.u32 [#allocation2], 4
      %s258 = int_to_ptr.vmem [resolvable:$true] %s257
      %s259 = sshll.u32 %s8, 4
      %s260 = int_to_ptr.hbm [resolvable:$true] %s259
      %262 = dma.vmem_to_hbm [thread:$0]  %s258, 32, %s260, [#allocation3]
    $region37: #{_lambda_.5} parent=1 // pred_fallthru
      _
    // Predicated region
    $region38: #{_lambda_.5} parent=1 // pred_check
      _
    $region39: #{_lambda_.5} parent=1 // pred_check_branch
      %264 = sbr.rel (0) target = $region41
    $region40: #{_lambda_.5} parent=1 // pred_region
      %266 = vsyncadd [#allocation5], 0
      %s268 = sshll.u32 [#allocation4], 4
      %s269 = int_to_ptr.vmem [resolvable:$true] %s268
      %s270 = sshll.u32 %s9, 4
      %s271 = int_to_ptr.hbm [resolvable:$true] %s270
      %273 = dma.vmem_to_hbm [thread:$0]  %s269, 32, %s271, [#allocation5]
    $region41: #{_lambda_.5} parent=1 // pred_fallthru
      _
    // Predicated region
    $region42: #{_lambda_.5} parent=1 // pred_check
      _
    $region43: #{_lambda_.5} parent=1 // pred_check_branch
      %275 = sbr.rel (0) target = $region45
    $region44: #{_lambda_.5} parent=1 // pred_region
      %277 = dma.done [#allocation3], 32
    $region45: #{_lambda_.5} parent=1 // pred_fallthru
      _
    // Predicated region
    $region46: #{_lambda_.5} parent=1 // pred_check
      _
    $region47: #{_lambda_.5} parent=1 // pred_check_branch
      %279 = sbr.rel (0) target = $region49
    $region48: #{_lambda_.5} parent=1 // pred_region
      %281 = dma.done [#allocation5], 32
    $region49: #{_lambda_.5} parent=1 // pred_fallthru
      _
    %282 = vsyncpa [#allocation3], 1
    %283 = vsyncpa [#allocation5], 1

</llo_original>
